<compile_context>
chip_gen: v5e
topology: v5e:2x2
jax: 0.10.0
libtpu: 0.0.40
codegen_flags: <defaults>
</compile_context>

<pallas_src>
import functools

import jax
import jax.numpy as jnp
from jax.experimental import pallas as pl
from jax.experimental.pallas import tpu as pltpu

_LANE = 128


def _round_up(a, m):
    return ((a + m - 1) // m) * m


def _device_vmem_plan():
    """Per-chip tile budget / VMEM cap / TC-count hints (conservative fallback)."""
    kind = ""
    try:
        d = jax.devices()[0]
        if d.platform == "tpu":
            kind = d.device_kind.lower()
    except Exception:
        pass
    if "v7" in kind:
        # v7x: 64 MiB VMEM per TensorCore, 2 TCs per chip.
        return {"is_v7x": True, "tile_budget": 12 << 20, "vmem_cap": 48 << 20}
    if any(v in kind for v in ("v4", "v5", "v6")):
        # v4/v5e/v6e class: 128 MiB physical VMEM, single TensorCore.
        return {"is_v7x": False, "tile_budget": 16 << 20, "vmem_cap": 96 << 20}
    # Unknown / older chip (or non-TPU backend): stay conservative.
    return {"is_v7x": False, "tile_budget": 4 << 20, "vmem_cap": 24 << 20}


def _mlp_epilogue(sum_f32, max_f32, w1_ref, w2_ref, o_ref, hw_true):
    """Shared-MLP + sigmoid on the pooled (bb, C) vectors; writes o_ref."""
    bb = sum_f32.shape[0]
    avg = sum_f32 * (1.0 / float(hw_true))                  # true-HW mean
    pooled = jnp.concatenate([avg, max_f32], axis=0)        # (2*bb, C): one MLP pass
    w1 = w1_ref[...].astype(jnp.float32)
    w2 = w2_ref[...].astype(jnp.float32)
    h = jnp.maximum(jnp.dot(pooled, w1, preferred_element_type=jnp.float32), 0.0)
    y = jnp.dot(h, w2, preferred_element_type=jnp.float32)  # (2*bb, C)
    out = jax.nn.sigmoid(y[:bb, :] + y[bb:, :])             # (bb, C)
    o_ref[...] = out.reshape(o_ref.shape).astype(o_ref.dtype)


def channel_attention_kernel(x_ref, w1_ref, w2_ref, o_ref, sum_ref, max_ref, *,
                             hw_true, hw_tile, n_hw, needs_mask):
    # x_ref:  (bb, C, hw_tile)   bb batch rows, one spatial tile (native dtype)
    # w1_ref: (C, HID)           shared MLP first 1x1 conv
    # w2_ref: (HID, C)           shared MLP second 1x1 conv
    # o_ref:  (bb, 1, C)         sigmoid(MLP(avg) + MLP(max))
    # sum_ref/max_ref: (bb, C) f32 accumulators, resident across the hw grid axis
    x = x_ref[...]

    if n_hw == 1 and not needs_mask:
        # Whole image in one step (common CBAM case): no accumulators needed.
        s = jnp.sum(x, axis=-1, dtype=jnp.float32)
        m = jnp.max(x, axis=-1).astype(jnp.float32)
        _mlp_epilogue(s, m, w1_ref, w2_ref, o_ref, hw_true)
        return

    hw_i = pl.program_id(1)
    last = n_hw - 1

    @pl.when(hw_i == 0)
    def _():
        sum_ref[...] = jnp.zeros(sum_ref.shape, sum_ref.dtype)
        max_ref[...] = jnp.full(max_ref.shape, -jnp.inf, max_ref.dtype)

    # Running sum: zero-padded lanes contribute nothing; accumulate in f32.
    sum_ref[...] += jnp.sum(x, axis=-1, dtype=jnp.float32)

    # Running max: reduce in native dtype; mask padded lanes only on the last tile.
    if needs_mask:
        @pl.when(hw_i != last)
        def _():
            max_ref[...] = jnp.maximum(
                max_ref[...], jnp.max(x, axis=-1).astype(jnp.float32))

        @pl.when(hw_i == last)
        def _():
            valid = hw_true - last * hw_tile          # trace-time constant
            lane = jax.lax.broadcasted_iota(jnp.int32, (1, 1, hw_tile), 2)
            x_m = jnp.where(lane < valid, x, jnp.array(-jnp.inf, dtype=x.dtype))
            max_ref[...] = jnp.maximum(
                max_ref[...], jnp.max(x_m, axis=-1).astype(jnp.float32))
    else:
        max_ref[...] = jnp.maximum(
            max_ref[...], jnp.max(x, axis=-1).astype(jnp.float32))

    @pl.when(hw_i == last)
    def _():
        _mlp_epilogue(sum_ref[...], max_ref[...], w1_ref, w2_ref, o_ref, hw_true)


def channel_attention(x, w1, w2, *, tile_budget_bytes=None, vmem_limit_bytes=None):
    """x: (B, C, H, W) NCHW (f32 or bf16).
    w1: (C, C//r)  = Conv2d(C, C//r, 1, bias=False).weight reshaped/transposed.
    w2: (C//r, C)  = Conv2d(C//r, C, 1, bias=False).weight reshaped/transposed.
    Returns (B, C, 1, 1) attention weights in x.dtype."""
    B, C, H, W = x.shape
    HW = H * W
    HID = w1.shape[1]
    itemsize = jnp.dtype(x.dtype).itemsize
    w_itemsize = jnp.dtype(w1.dtype).itemsize

    plan = _device_vmem_plan()
    if tile_budget_bytes is None:
        tile_budget_bytes = plan["tile_budget"]
    vmem_cap = plan["vmem_cap"]
    is_v7x = plan["is_v7x"]

    row_bytes = C * HW * itemsize                    # one batch element, full image

    if row_bytes <= tile_budget_bytes:
        # Whole (C, HW) per batch element fits one tile: no spatial tiling, no pad.
        hw_tile, HW_pad, n_hw, needs_mask = HW, HW, 1, False
        bb = 1
        for cand in range(1, B + 1):
            if B % cand == 0 and cand * row_bytes <= tile_budget_bytes:
                bb = cand
        # v7x only: keep >= 2 batch grid steps so both TensorCores get work.
        if is_v7x and B > 1 and B // bb == 1:
            smaller = [d for d in range(1, B) if B % d == 0]
            if smaller:
                bb = max(smaller)
        # TODO(synk): for B == 1 on v7x, split the HW reduction across the two
        # TensorCores (core_map + per-core partial sum/max) instead of idling one.
    else:
        # Genuine spatial tiling (large C*HW): lane-aligned tile, pad + mask last.
        bb = 1
        hw_tile = max(_LANE, (tile_budget_bytes // (C * itemsize)) // _LANE * _LANE)
        hw_tile = min(hw_tile, _round_up(HW, _LANE))
        if hw_tile >= HW:                            # degenerate: single tile covers HW
            hw_tile, HW_pad, n_hw, needs_mask = HW, HW, 1, False
        else:
            HW_pad = _round_up(HW, hw_tile)
            n_hw = HW_pad // hw_tile
            needs_mask = HW_pad != HW

    grid_b = B // bb

    # Layout (+ zero padding only when HW is actually tiled; max path masks it).
    x_flat = x.reshape(B, C, HW)
    if HW_pad != HW:
        x_flat = jnp.pad(x_flat, ((0, 0), (0, 0), (0, HW_pad - HW)))

    # Explicit VMEM budget: double-buffered x tile + weights + output + scratch.
    x_buf = bb * C * hw_tile * itemsize
    w_buf = (C * HID + HID * C) * w_itemsize
    o_buf = bb * C * itemsize
    scr = 2 * bb * C * 4
    needed = 2 * x_buf + 2 * w_buf + 2 * o_buf + scr
    if vmem_limit_bytes is None:
        vmem_limit_bytes = min(vmem_cap, max(int(needed * 1.5) + (2 << 20), 24 << 20))

    kernel = functools.partial(
        channel_attention_kernel,
        hw_true=HW, hw_tile=hw_tile, n_hw=n_hw, needs_mask=needs_mask)

    cost = pl.CostEstimate(
        flops=int(8 * B * C * HID + 2 * B * C * HW),
        transcendentals=int(B * C),
        bytes_accessed=int(B * C * HW_pad * itemsize
                           + 2 * C * HID * w_itemsize
                           + B * C * itemsize),
    )

    out = pl.pallas_call(
        kernel,
        out_shape=jax.ShapeDtypeStruct((B, 1, C), x.dtype),
        grid_spec=pltpu.PrefetchScalarGridSpec(
            num_scalar_prefetch=0,
            grid=(grid_b, n_hw),                      # reduction axis last
            in_specs=[
                pl.BlockSpec((bb, C, hw_tile), lambda b, k: (b, 0, k)),
                pl.BlockSpec((C, HID), lambda b, k: (0, 0)),   # constant -> DMA not re-issued
                pl.BlockSpec((HID, C), lambda b, k: (0, 0)),
            ],
            out_specs=pl.BlockSpec((bb, 1, C), lambda b, k: (b, 0, 0)),
            scratch_shapes=[pltpu.VMEM((bb, C), jnp.float32),   # running sum
                            pltpu.VMEM((bb, C), jnp.float32)],  # running max
        ),
        compiler_params=pltpu.CompilerParams(
            dimension_semantics=("parallel", "arbitrary"),
            vmem_limit_bytes=int(vmem_limit_bytes)),
        cost_estimate=cost,
    )(x_flat, w1, w2)

    return out.reshape(B, C, 1, 1)


def reference(x, w1, w2):
    """Pure-JAX reference matching the PyTorch forward."""
    xf = x.astype(jnp.float32)
    avg = jnp.mean(xf, axis=(2, 3))                   # (B, C)
    mx = jnp.max(xf, axis=(2, 3))                     # (B, C)

    def mlp(v):
        h = jnp.maximum(v @ w1.astype(jnp.float32), 0.0)
        return h @ w2.astype(jnp.float32)

    return jax.nn.sigmoid(mlp(avg) + mlp(mx))[:, :, None, None]


if __name__ == "__main__":
    # Small shapes consistent with the module: channel divisible by ratio.
    B, C, H, W = 2, 32, 16, 16
    RATIO = 4
    HID = C // RATIO

    key = jax.random.PRNGKey(0)
    kx, k1, k2 = jax.random.split(key, 3)

    x = jax.random.normal(kx, (B, C, H, W), dtype=jnp.float32)
    # Conv2d(C, C//r, 1) weight (C//r, C, 1, 1) -> used as matmul (C, C//r).
    w1 = jax.random.normal(k1, (C, HID), dtype=jnp.float32) * (1.0 / jnp.sqrt(C))
    # Conv2d(C//r, C, 1) weight (C, C//r, 1, 1) -> used as matmul (C//r, C).
    w2 = jax.random.normal(k2, (HID, C), dtype=jnp.float32) * (1.0 / jnp.sqrt(HID))

    out = jax.block_until_ready(channel_attention(x, w1, w2))
    ref = reference(x, w1, w2)
    assert out.shape == (B, C, 1, 1), out.shape
    assert jnp.allclose(out, ref, atol=1e-5, rtol=1e-5), \
        float(jnp.max(jnp.abs(out - ref)))

    # Non-128-multiple spatial: whole-image single-step path, NO wrapper-side pad.
    x2 = jax.random.normal(kx, (4, C, 7, 7), dtype=jnp.float32)
    out2 = jax.block_until_ready(channel_attention(x2, w1, w2))
    ref2 = reference(x2, w1, w2)
    assert jnp.allclose(out2, ref2, atol=1e-5, rtol=1e-5), \
        float(jnp.max(jnp.abs(out2 - ref2)))

    # Forced spatial tiling: exercises the padded / last-tile-masked reduction
    # path (mostly-negative data stresses correctness of the masked max).
    x3 = jax.random.normal(kx, (1, C, 20, 20), dtype=jnp.float32) - 2.0
    out3 = jax.block_until_ready(
        channel_attention(x3, w1, w2, tile_budget_bytes=C * 128 * 4))
    ref3 = reference(x3, w1, w2)
    assert jnp.allclose(out3, ref3, atol=1e-5, rtol=1e-5), \
        float(jnp.max(jnp.abs(out3 - ref3)))

    print("KERNEL_OK")
</pallas_src>

<mosaic_0001>
module attributes {stable_mosaic.version = 11 : i64} {
  func.func @channel_attention_kernel(%arg0: i32, %arg1: i32, %arg2: memref<2x32x256xf32, #tpu.memory_space<vmem>>, %arg3: memref<32x8xf32, #tpu.memory_space<vmem>>, %arg4: memref<8x32xf32, #tpu.memory_space<vmem>>, %arg5: memref<2x1x32xf32, #tpu.memory_space<vmem>>, %arg6: memref<2x32xf32, #tpu.memory_space<vmem>>, %arg7: memref<2x32xf32, #tpu.memory_space<vmem>>) attributes {dimension_semantics = [#tpu.dimension_semantics<parallel>, #tpu.dimension_semantics<arbitrary>], iteration_bounds = array<i64: 1, 1>, scalar_prefetch = 0 : i64, scratch_operands = 2 : i64, tpu.core_type = #tpu.core_type<tc>, window_params = [{transform_indices = @transform_0, window_bounds = array<i64: 2, 32, 256>}, {pipeline_mode = #tpu.pipeline_mode<synchronous>, transform_indices = @transform_1, window_bounds = array<i64: 32, 8>}, {pipeline_mode = #tpu.pipeline_mode<synchronous>, transform_indices = @transform_2, window_bounds = array<i64: 8, 32>}, {transform_indices = @transform_3, window_bounds = array<i64: 2, 1, 32>}]} {
    %c0 = arith.constant 0 : index
    %c0_0 = arith.constant 0 : index
    %c0_1 = arith.constant 0 : index
    %0 = vector.load %arg2[%c0, %c0_0, %c0_1] : memref<2x32x256xf32, #tpu.memory_space<vmem>>, vector<2x32x256xf32>
    %cst = arith.constant dense<0.000000e+00> : vector<2x32xf32>
    %1 = vector.multi_reduction <add>, %0, %cst [2] : vector<2x32x256xf32> to vector<2x32xf32>
    %cst_2 = arith.constant dense<0xFF800000> : vector<2x32xf32>
    %2 = vector.multi_reduction <maximumf>, %0, %cst_2 [2] : vector<2x32x256xf32> to vector<2x32xf32>
    %cst_3 = arith.constant 3.906250e-03 : f32
    %3 = vector.broadcast %cst_3 : f32 to vector<2x32xf32>
    %4 = arith.mulf %1, %3 : vector<2x32xf32>
    %5 = tpu.concatenate %4, %2 in 0 : vector<2x32xf32>, vector<2x32xf32> -> vector<4x32xf32>
    %c0_4 = arith.constant 0 : index
    %c0_5 = arith.constant 0 : index
    %6 = vector.load %arg3[%c0_4, %c0_5] : memref<32x8xf32, #tpu.memory_space<vmem>>, vector<32x8xf32>
    %c0_6 = arith.constant 0 : index
    %c0_7 = arith.constant 0 : index
    %7 = vector.load %arg4[%c0_6, %c0_7] : memref<8x32xf32, #tpu.memory_space<vmem>>, vector<8x32xf32>
    %cst_8 = arith.constant dense<0.000000e+00> : vector<4x8xf32>
    %8 = tpu.matmul %5, %6, %cst_8 {dimension_numbers = #tpu.dot_dimension_numbers<[1], [0], [0], [1], [0, 0, 1, 1], [], []>} : vector<4x32xf32>, vector<32x8xf32>, vector<4x8xf32> -> vector<4x8xf32>
    %cst_9 = arith.constant 0.000000e+00 : f32
    %9 = vector.broadcast %cst_9 : f32 to vector<4x8xf32>
    %10 = arith.maximumf %8, %9 : vector<4x8xf32>
    %cst_10 = arith.constant dense<0.000000e+00> : vector<4x32xf32>
    %11 = tpu.matmul %10, %7, %cst_10 {dimension_numbers = #tpu.dot_dimension_numbers<[1], [0], [0], [1], [0, 0, 1, 1], [], []>} : vector<4x8xf32>, vector<8x32xf32>, vector<4x32xf32> -> vector<4x32xf32>
    %12 = vector.extract_strided_slice %11 {offsets = [0, 0], sizes = [2, 32], strides = [1, 1]} : vector<4x32xf32> to vector<2x32xf32>
    %13 = vector.extract_strided_slice %11 {offsets = [2, 0], sizes = [2, 32], strides = [1, 1]} : vector<4x32xf32> to vector<2x32xf32>
    %14 = arith.addf %12, %13 : vector<2x32xf32>
    %15 = arith.negf %14 : vector<2x32xf32>
    %16 = math.exp %15 : vector<2x32xf32>
    %cst_11 = arith.constant 1.000000e+00 : f32
    %17 = vector.broadcast %cst_11 : f32 to vector<2x32xf32>
    %18 = arith.addf %17, %16 : vector<2x32xf32>
    %19 = arith.divf %17, %18 : vector<2x32xf32>
    %20 = vector.shape_cast %19 : vector<2x32xf32> to vector<2x1x32xf32>
    %c0_12 = arith.constant 0 : index
    %c0_13 = arith.constant 0 : index
    %c0_14 = arith.constant 0 : index
    %21 = vector.load %arg5[%c0_12, %c0_13, %c0_14] : memref<2x1x32xf32, #tpu.memory_space<vmem>>, vector<2x1x32xf32>
    tpu.vector_store %arg5[%c0_12, %c0_13, %c0_14], %20 {strides = array<i32>} : memref<2x1x32xf32, #tpu.memory_space<vmem>>, vector<2x1x32xf32>,
    return
  }
  func.func @transform_0(%arg0: i32, %arg1: i32) -> (i32, i32, i32) {
    %c0_i32 = arith.constant 0 : i32
    %c0_i32_0 = arith.constant 0 : i32
    return %arg0, %c0_i32, %arg1 : i32, i32, i32
  }
  func.func @transform_1(%arg0: i32, %arg1: i32) -> (i32, i32) {
    %c0_i32 = arith.constant 0 : i32
    %c0_i32_0 = arith.constant 0 : i32
    %c0_i32_1 = arith.constant 0 : i32
    return %c0_i32, %c0_i32_0 : i32, i32
  }
  func.func @transform_2(%arg0: i32, %arg1: i32) -> (i32, i32) {
    %c0_i32 = arith.constant 0 : i32
    %c0_i32_0 = arith.constant 0 : i32
    %c0_i32_1 = arith.constant 0 : i32
    return %c0_i32, %c0_i32_0 : i32, i32
  }
  func.func @transform_3(%arg0: i32, %arg1: i32) -> (i32, i32, i32) {
    %c0_i32 = arith.constant 0 : i32
    %c0_i32_0 = arith.constant 0 : i32
    %c0_i32_1 = arith.constant 0 : i32
    return %arg0, %c0_i32, %c0_i32_0 : i32, i32, i32
  }
}

</mosaic_0001>

<llo_original>
// kernel: tpu_custom_call.1
$region0: #{tpu_custom_call.1}
  #allocation0 [shape = 'u32[]', space=smem, size = 0x4, offset = 0x4, fixed_abs, tag = 'smem constant byte address 0x4 - core index']
  #allocation1 [shape = 'u32[72,128]{1,0:T(1,128)}', space=vmem, size = 0x9000, scoped, tag = 'internal scratch']
  #allocation2 [shape = 'f32[2,32]{1,0:T(2,128)}', space=vmem, size = 0x400, scoped, tag = 'scratch operand']
  #allocation3 [shape = 'f32[2,32]{1,0:T(2,128)}', space=vmem, size = 0x400, scoped, tag = 'scratch operand']
  %s0 = inlined_call_operand.hbm [shape: f32[2,32,256], index: 0, kind: input, shape index: {}]
  %s1 = inlined_call_operand.vmem [shape: f32[32,8], index: 1, kind: input, shape index: {}]
  %s2 = inlined_call_operand.vmem [shape: f32[8,32], index: 2, kind: input, shape index: {}]
  %s3 = inlined_call_operand.hbm [shape: f32[2,1,32], index: 3, kind: output, shape index: {}]
  %s4 = sld [smem:[#allocation0]]
  $region26: #{tpu_custom_call.1} parent=0
    _
  %s6 = ssub.s32 1, %s4
  %s7 = scalar_select 0, %s6, %s4
  $region1: #{tpu_custom_call.1} parent=0
    #allocation4 [shape = 'u8[65536]{0}', space=vmem, size = 0x10000, scoped, tag = 'input window, operand 0, single buffered']
    #allocation5 [shape = 's32[1]{0}', space=sflag, size = 0x4, scoped, tag = 'scoped memory for tpu_custom_call.1']
    #allocation6 [shape = 's32[1]{0}', space=sflag, size = 0x4, scoped, tag = 'scoped memory for tpu_custom_call.1']
    #allocation7 [shape = 'u8[1024]{0}', space=vmem, size = 0x400, scoped, tag = 'output window, operand 0, single buffered']
    %8 = vsyncpa [#allocation5], 0
    %9 = vsyncpa [#allocation6], 0
    // Predicated region
    $region2: #{tpu_custom_call.1} parent=1 // pred_check
      _
    $region3: #{tpu_custom_call.1} parent=1 // pred_check_branch
      %11 = sbr.rel (0) target = $region5
    $region4: #{tpu_custom_call.1} parent=1 // pred_region
      %13 = vsyncadd [#allocation5], 0
      %s14 = sshll.u32 %s0, 4
      %s15 = int_to_ptr.hbm [resolvable:$true] %s14
      %s16 = sshll.u32 [#allocation4], 4
      %s17 = int_to_ptr.vmem [resolvable:$true] %s16
      %22 = dma.hbm_to_vmem [thread:$0]  %s15, 2048, %s17, [#allocation5], 256, 256, 16
    $region5: #{tpu_custom_call.1} parent=1 // pred_fallthru
      _
    // Predicated region
    $region6: #{tpu_custom_call.1} parent=1 // pred_check
      _
    $region7: #{tpu_custom_call.1} parent=1 // pred_check_branch
      %24 = sbr.rel (0) target = $region9
    $region8: #{tpu_custom_call.1} parent=1 // pred_region
      _
    $region9: #{tpu_custom_call.1} parent=1 // pred_fallthru
      _
    // Predicated region
    $region10: #{tpu_custom_call.1} parent=1 // pred_check
      _
    $region11: #{tpu_custom_call.1} parent=1 // pred_check_branch
      %26 = sbr.rel (0) target = $region13
    $region12: #{tpu_custom_call.1} parent=1 // pred_region
      _
    $region13: #{tpu_custom_call.1} parent=1 // pred_fallthru
      _
    // Predicated region
    $region14: #{tpu_custom_call.1} parent=1 // pred_check
      _
    $region15: #{tpu_custom_call.1} parent=1 // pred_check_branch
      %28 = sbr.rel (0) target = $region17
    $region16: #{tpu_custom_call.1} parent=1 // pred_region
      %30 = dma.done [#allocation5], 2048
    $region17: #{tpu_custom_call.1} parent=1 // pred_fallthru
      _
    %v31 = vld [vmem:[#allocation4] sm:$0xff]
    %v32 = vld [vmem:[#allocation4 + $0x8] sm:$0xff]
    %v33 = vld [vmem:[#allocation4 + $0x10] sm:$0xff]
    %v34 = vld [vmem:[#allocation4 + $0x18] sm:$0xff]
    %v35 = vld [vmem:[#allocation4 + $0x20] sm:$0xff]
    %v36 = vld [vmem:[#allocation4 + $0x28] sm:$0xff]
    %v37 = vld [vmem:[#allocation4 + $0x30] sm:$0xff]
    %v38 = vld [vmem:[#allocation4 + $0x38] sm:$0xff]
    %v39 = vld [vmem:[#allocation4 + $0x40] sm:$0xff]
    %v40 = vld [vmem:[#allocation4 + $0x48] sm:$0xff]
    %v41 = vld [vmem:[#allocation4 + $0x50] sm:$0xff]
    %v42 = vld [vmem:[#allocation4 + $0x58] sm:$0xff]
    %v43 = vld [vmem:[#allocation4 + $0x60] sm:$0xff]
    %v44 = vld [vmem:[#allocation4 + $0x68] sm:$0xff]
    %v45 = vld [vmem:[#allocation4 + $0x70] sm:$0xff]
    %v46 = vld [vmem:[#allocation4 + $0x78] sm:$0xff]
    %v47 = vadd.f32 %v31, %v32
    %48 = vadd.xlane.f32.xlu0 %v47
    %v49 = vpop.xlane.xlu0 %48
    %v50 = vadd.f32 %v33, %v34
    %51 = vadd.xlane.f32.xlu0 %v50
    %v52 = vpop.xlane.xlu0 %51
    %v53 = vadd.f32 %v35, %v36
    %54 = vadd.xlane.f32.xlu0 %v53
    %v55 = vpop.xlane.xlu0 %54
    %v56 = vadd.f32 %v37, %v38
    %57 = vadd.xlane.f32.xlu0 %v56
    %v58 = vpop.xlane.xlu0 %57
    %v59 = vadd.f32 %v39, %v40
    %60 = vadd.xlane.f32.xlu0 %v59
    %v61 = vpop.xlane.xlu0 %60
    %v62 = vadd.f32 %v41, %v42
    %63 = vadd.xlane.f32.xlu0 %v62
    %v64 = vpop.xlane.xlu0 %63
    %v65 = vadd.f32 %v43, %v44
    %66 = vadd.xlane.f32.xlu0 %v65
    %v67 = vpop.xlane.xlu0 %66
    %v68 = vadd.f32 %v45, %v46
    %69 = vadd.xlane.f32.xlu0 %v68
    %v70 = vpop.xlane.xlu0 %69
    %v71 = vmax.f32 %v31, %v32
    %72 = vmax.xlane.f32.xlu0 %v71
    %v73 = vpop.xlane.xlu0 %72
    %v74 = vmax.f32 %v33, %v34
    %75 = vmax.xlane.f32.xlu0 %v74
    %v76 = vpop.xlane.xlu0 %75
    %v77 = vmax.f32 %v35, %v36
    %78 = vmax.xlane.f32.xlu0 %v77
    %v79 = vpop.xlane.xlu0 %78
    %v80 = vmax.f32 %v37, %v38
    %81 = vmax.xlane.f32.xlu0 %v80
    %v82 = vpop.xlane.xlu0 %81
    %v83 = vmax.f32 %v39, %v40
    %84 = vmax.xlane.f32.xlu0 %v83
    %v85 = vpop.xlane.xlu0 %84
    %v86 = vmax.f32 %v41, %v42
    %87 = vmax.xlane.f32.xlu0 %v86
    %v88 = vpop.xlane.xlu0 %87
    %v89 = vmax.f32 %v43, %v44
    %90 = vmax.xlane.f32.xlu0 %v89
    %v91 = vpop.xlane.xlu0 %90
    %v92 = vmax.f32 %v45, %v46
    %93 = vmax.xlane.f32.xlu0 %v92
    %v94 = vpop.xlane.xlu0 %93
    %v95 = vmul.f32 %v49, 0.00390625
    %v96 = vmul.f32 %v52, 0.00390625
    %v97 = vmul.f32 %v55, 0.00390625
    %v98 = vmul.f32 %v58, 0.00390625
    %v99 = vmul.f32 %v61, 0.00390625
    %v100 = vmul.f32 %v64, 0.00390625
    %v101 = vmul.f32 %v67, 0.00390625
    %v102 = vmul.f32 %v70, 0.00390625
    %v111 = vlaneseq
    %v112 = vand.u32 %v111, 127
    %v113 = vperm.slane %v95, %v112
    %v114 = vadd.s32 %v112, 4294967288
    %v115 = vperm.slane %v96, %v114
    %vm116 = vcmask 130112
    %v117 = vsel %vm116, %v115, %v113
    %v118 = vadd.s32 %v112, 4294967280
    %v119 = vperm.slane %v97, %v118
    %vm120 = vcmask 195712
    %v121 = vsel %vm120, %v119, %v117
    %v122 = vadd.s32 %v112, 4294967272
    %v123 = vperm.slane %v98, %v122
    %vm124 = vcmask 261312
    %v125 = vsel %vm124, %v123, %v121
    %v126 = vperm.slane %v99, %v112
    %v127 = vperm.slane %v100, %v114
    %v128 = vsel %vm116, %v127, %v126
    %v129 = vperm.slane %v101, %v118
    %v130 = vsel %vm120, %v129, %v128
    %v131 = vperm.slane %v102, %v122
    %v132 = vsel %vm124, %v131, %v130
    %vm133 = vcmask 1041409
    %v134 = vsel %vm133, %v132, %v125
    %v144 = vperm.slane %v73, %v112
    %v145 = vperm.slane %v76, %v114
    %v146 = vsel %vm116, %v145, %v144
    %v147 = vperm.slane %v79, %v118
    %v148 = vsel %vm120, %v147, %v146
    %v149 = vperm.slane %v82, %v122
    %v150 = vsel %vm124, %v149, %v148
    %v151 = vperm.slane %v85, %v112
    %v152 = vperm.slane %v88, %v114
    %v153 = vsel %vm116, %v152, %v151
    %v154 = vperm.slane %v91, %v118
    %v155 = vsel %vm120, %v154, %v153
    %v156 = vperm.slane %v94, %v122
    %v157 = vsel %vm124, %v156, %v155
    %vm158 = vcmask 1043459
    %v159 = vsel %vm158, %v157, %v150
    %vm161 = vcmask 1041408
    %v162 = vsel %vm161, %v134, %v159
    %v163 = vld [vmem:[%s1] sm:$0xff]
    %v164 = vld [vmem:[%s1 + $0x8] sm:$0xff]
    %v165 = vld [vmem:[%s1 + $0x10] sm:$0xff]
    %v166 = vld [vmem:[%s1 + $0x18] sm:$0xff]
    %v167 = vld [vmem:[%s2] sm:$0xff]
    %vm168 = vcmask 261120
    %v170 = vsel %vm168, %v162, 0
    %172 = vmatpush.msra.mxu0 0.0
    %173 = vmatpush.msra.mxu0 0.0
    %174 = vmatpush.msra.mxu0 0.0
    %175 = vmatpush.msra.mxu0 0.0
    %176 = vmatpush.msra.mxu0 0.0
    %177 = vmatpush.msra.mxu0 0.0
    %178 = vmatpush.msra.mxu0 0.0
    %179 = vmatpush.msra.mxu0 0.0
    %180 = vmatpush.msra.mxu0 0.0
    %181 = vmatpush.msra.mxu0 0.0
    %182 = vmatpush.msra.mxu0 0.0
    %183 = vmatpush.msra.mxu0 0.0
    %184 = vmatpush.msra.mxu0 %v166
    %185 = vmatpush.msra.mxu0 %v165
    %186 = vmatpush.msra.mxu0 %v164
    %187 = vmatpush.msra.mxu0 %v163
    %188 = vmatmul.f32.gmra.mxu0 %v170
    %v189 = vpop.f32.mrf.mxu0
    %v190 = vadd.f32 0.0, %v189
    %191 = vdwg.mxu0
    %v192 = vmax.f32 %v190, 0.0
    %vm193 = vcmask 64512
    %v195 = vsel %vm193, %v192, 0
    %197 = vmatpush.msra.mxu0 0.0
    %198 = vmatpush.msra.mxu0 0.0
    %199 = vmatpush.msra.mxu0 0.0
    %200 = vmatpush.msra.mxu0 0.0
    %201 = vmatpush.msra.mxu0 0.0
    %202 = vmatpush.msra.mxu0 0.0
    %203 = vmatpush.msra.mxu0 0.0
    %204 = vmatpush.msra.mxu0 0.0
    %205 = vmatpush.msra.mxu0 0.0
    %206 = vmatpush.msra.mxu0 0.0
    %207 = vmatpush.msra.mxu0 0.0
    %208 = vmatpush.msra.mxu0 0.0
    %209 = vmatpush.msra.mxu0 0.0
    %210 = vmatpush.msra.mxu0 0.0
    %211 = vmatpush.msra.mxu0 0.0
    %212 = vmatpush.msra.mxu0 %v167
    %213 = vmatmul.f32.gmra.mxu0 %v195
    %v214 = vpop.f32.mrf.mxu0
    %v215 = vadd.f32 0.0, %v214
    %216 = vdwg.mxu0
    %v218 = vrot.slane %v215, 2
    %v220 = vadd.f32 %v215, %v218
    %v221 = vxor.u32 %v220, 2147483648
    %v222 = vmul.f32 %v221, 1.442695
    %v223 = vpow.pop %v222
    %v224 = vadd.f32 %v223, 1.0
    %v225 = vrcp.pop %v224
    %v226 = vmul.f32 %v224, %v225
    %v227 = vsub.f32 1.0, %v226
    %v228 = vmul.f32 %v225, %v227
    %v229 = vadd.f32 %v225, %v228
    %vm230 = vweird.f32 %v224
    %vm231 = vweird.f32 %v225
    %vm232 = vmor %vm230, %vm231
    %v233 = vsel %vm232, %v225, %v229
    %v234 = vand.u32 2147483647, %v224
    %vm235 = vcmp.eq.f32.partialorder %v234, 8.507059e+37
    %v236 = vand.u32 %v224, 2147483648
    %v237 = vor.u32 1.1754944e-38, %v236
    %v238 = vsel %vm235, %v237, %v233
    %v239 = vmul.f32 1.0, %v238
    %v241 = vrot.slane %v239, 1
    %vm243 = vcmask 253952
    %244 = vst.msk [vmem:[#allocation7] sm:$0x1] %vm243, %v239
    %245 = vst.msk [vmem:[#allocation7 + $0x1] sm:$0x1] %vm243, %v241
    // Predicated region
    $region18: #{tpu_custom_call.1} parent=1 // pred_check
      _
    $region19: #{tpu_custom_call.1} parent=1 // pred_check_branch
      %247 = sbr.rel (0) target = $region21
    $region20: #{tpu_custom_call.1} parent=1 // pred_region
      %249 = vsyncadd [#allocation6], 0
      %s250 = sshll.u32 [#allocation7], 4
      %s251 = int_to_ptr.vmem [resolvable:$true] %s250
      %s252 = sshll.u32 %s3, 4
      %s253 = int_to_ptr.hbm [resolvable:$true] %s252
      %258 = dma.vmem_to_hbm [thread:$0]  %s251, 32, %s253, [#allocation6], 16, 16, 1
    $region21: #{tpu_custom_call.1} parent=1 // pred_fallthru
      _
    // Predicated region
    $region22: #{tpu_custom_call.1} parent=1 // pred_check
      _
    $region23: #{tpu_custom_call.1} parent=1 // pred_check_branch
      %260 = sbr.rel (0) target = $region25
    $region24: #{tpu_custom_call.1} parent=1 // pred_region
      %262 = dma.done [#allocation6], 32
    $region25: #{tpu_custom_call.1} parent=1 // pred_fallthru
      _
    %263 = vsyncpa [#allocation5], 1
    %264 = vsyncpa [#allocation6], 1

</llo_original>
